<compile_context>
chip_gen: v6e
topology: v6e:2x2x1
jax: 0.10.0
libtpu: 0.0.40
codegen_flags: <defaults>
</compile_context>

<pallas_src>
import jax
import jax.numpy as jnp
from jax import lax
from jax.experimental import pallas as pl
from jax.experimental.pallas import tpu as pltpu

KERNEL_SIZE = 4
N_FEATS = 48
A_CUBIC = -0.5
KK = KERNEL_SIZE * KERNEL_SIZE
PADDING = KERNEL_SIZE // 2
OFFSET = (KERNEL_SIZE % 2) / 2.0


# ----------------------------------------------------------------------------
# Shared math (used by the Pallas kernels and by the pure-JAX reference)
# ----------------------------------------------------------------------------
def _fast_recip(v, newton=1):
    """Reciprocal seeded on the EUP + `newton` Newton steps (1 step is ~1e-6 rel error)."""
    r = pl.reciprocal(v, approx=True)
    for _ in range(newton):
        r = r * (2.0 - v * r)
    return r


def _exact_recip(v):
    return 1.0 / v


def _cubic_contribution(x, a=A_CUBIC):
    ax = jnp.abs(x)
    ax2 = ax * ax
    ax3 = ax * ax2
    r01 = (ax <= 1.0).astype(x.dtype)
    r12 = jnp.logical_and(ax > 1.0, ax <= 2.0).astype(x.dtype)
    c01 = ((a + 2.0) * ax3 - (a + 3.0) * ax2 + 1.0) * r01
    c12 = (a * ax3 - 5.0 * a * ax2 + 8.0 * a * ax - 4.0 * a) * r12
    return c01 + c12


def _tap_offsets():
    """Flattened (kx-minor / ky-major) tap offsets, baked as in-kernel constants: (KK, 1) each."""
    base = float(PADDING - KERNEL_SIZE + 1) + OFFSET
    tap = lax.broadcasted_iota(jnp.int32, (KK, 1), 0).astype(jnp.float32)
    ky = jnp.floor(tap * (1.0 / KERNEL_SIZE))
    kx = tap - KERNEL_SIZE * ky
    return base + kx, base + ky


def _modulated_taps_t(p, recip):
    """Modulator (legacy=True, regularize=True) + calibrated tap offsets, lane-dense layout.

    p:     (8, TN) rows = [dx0, dx1, dy0, dy1, frac_x, frac_y, *, *]
    recip: reciprocal implementation (EUP-based inside the kernel, exact 1/x in the reference)
    returns x, y of shape (KK, TN)
    """
    dx0 = p[0:1, :]
    dx1 = p[1:2, :]
    dy0 = p[2:3, :]
    dy1 = p[3:4, :]
    fx = p[4:5, :]
    fy = p[5:6, :]

    det = dx0 * dy1 - dx1 * dy0
    inv_det = recip(det * det)                      # NOTE: no eps guard, mirrors torch semantics
    aa = (dx1 * dx1 + dy1 * dy1) * inv_det
    bb = (dx0 * dx0 + dy0 * dy0) * inv_det
    cc = 2.0 * (dx0 * dx1 + dy0 * dy1) * inv_det

    # theta = 0.5 * atan2(cc, bb - aa); only cos(theta), sin(theta) needed -> half-angle identities.
    ba = bb - aa
    rr = cc * cc + ba * ba
    safe = rr > 0.0
    inv_r = lax.rsqrt(jnp.where(safe, rr, 1.0))
    cos_phi = jnp.where(safe, ba * inv_r, 1.0)      # atan2(0, 0) == 0
    sin_phi = jnp.where(safe, cc * inv_r, 0.0)
    cos_t = jnp.sqrt(jnp.maximum(0.5 * (1.0 + cos_phi), 0.0))
    sin_t = jnp.where(sin_phi >= 0.0, 1.0, -1.0) * jnp.sqrt(
        jnp.maximum(0.5 * (1.0 - cos_phi), 0.0))

    cos2 = cos_t * cos_t
    num = 2.0 * cos2 - 1.0
    den_share = (aa + bb) * cos2
    pp = lax.rsqrt(jnp.maximum(num * recip(den_share - bb), 1.0))   # regularize=True
    qq = lax.rsqrt(jnp.maximum(num * recip(den_share - aa), 1.0))

    # legacy=True calibration
    diff = pp - qq
    calb_share = diff * cos2
    calb_x = qq + calb_share
    calb_y = pp - calb_share
    calb_diag = cos_t * sin_t * diff

    pwx, pwy = _tap_offsets()                       # (KK, 1) constants, no input DMA
    pos_wx = pwx - fx                               # (KK, TN)
    pos_wy = pwy - fy
    x = calb_x * pos_wx + calb_diag * pos_wy
    y = calb_y * pos_wy + calb_diag * pos_wx
    return x, y


# ----------------------------------------------------------------------------
# Pallas kernels
# ----------------------------------------------------------------------------
def _cubic_kernel(params_ref, out_ref):
    x, y = _modulated_taps_t(params_ref[...], _fast_recip)
    w = _cubic_contribution(x) * _cubic_contribution(y)
    s = jnp.sum(w, axis=0, keepdims=True)           # (1, TN) sublane reduce (XLU)
    out_ref[...] = (w * _fast_recip(s)).astype(out_ref.dtype)


def _net_kernel(params_ref, w1_ref, b1_ref, w2_ref, b2_ref, w3_ref, b3_ref, out_ref):
    x, y = _modulated_taps_t(params_ref[...], _fast_recip)
    # Sublane-axis stack of the x / y tap halves (lane axis untouched -> cheap) so each MLP
    # layer is a single MXU matmul instead of a split pair.
    xy = jnp.concatenate([x, y], axis=0)             # (2*KK, TN)
    w1 = w1_ref[...]
    dt = w1.dtype                                    # bf16 by default (MXU dtype)
    h = jnp.dot(w1, xy.astype(dt), preferred_element_type=jnp.float32) + b1_ref[...]
    h = jnp.maximum(h, 0.0)
    h = jnp.dot(w2_ref[...], h.astype(dt), preferred_element_type=jnp.float32) + b2_ref[...]
    h = jnp.maximum(h, 0.0)
    o = jnp.dot(w3_ref[...], h.astype(dt), preferred_element_type=jnp.float32) + b3_ref[...]
    # weight_x * weight_y (no_mul=False); rows [0:KK] / [KK:2KK] of the fused head.
    out_ref[...] = (o[:KK, :] * o[KK:, :]).astype(out_ref.dtype)


# ----------------------------------------------------------------------------
# pallas_call wrappers
# ----------------------------------------------------------------------------
def _tiling(n, max_tn=8192, num_cores=1):
    """Lane-dense tiling: positions per grid step (multiple of 128) + padded total width.

    No forced multi-step split (single-TC v5e/v6e); when num_cores > 1 (v7x megacore) the step
    count is rounded up to a multiple of num_cores so both TensorCores stay busy.
    """
    max_tn = max(128, (max_tn // 128) * 128)
    n128 = ((n + 127) // 128) * 128
    steps = max(1, -(-n128 // max_tn))
    if num_cores > 1 and n128 >= num_cores * 128 and steps % num_cores:
        steps += num_cores - steps % num_cores
    tn = ((-(-n128 // steps) + 127) // 128) * 128
    return tn, steps * tn


def _run_cubic(params, tn, out_dtype=jnp.float32):
    n_pad = params.shape[1]
    return pl.pallas_call(
        _cubic_kernel,
        out_shape=jax.ShapeDtypeStruct((KK, n_pad), out_dtype),
        grid_spec=pltpu.PrefetchScalarGridSpec(
            num_scalar_prefetch=0,
            grid=(n_pad // tn,),
            in_specs=[pl.BlockSpec((8, tn), lambda i: (0, i))],
            out_specs=pl.BlockSpec((KK, tn), lambda i: (0, i))),
        compiler_params=pltpu.CompilerParams(dimension_semantics=("parallel",)),
    )(params)


def _run_net(params, net_w, tn, out_dtype=jnp.float32):
    n_pad = params.shape[1]

    def const(a):
        # Constant-index whole-array spec: DMA'd once (index never changes), ~10 KB total.
        return pl.BlockSpec(a.shape, lambda i: (0, 0))

    return pl.pallas_call(
        _net_kernel,
        out_shape=jax.ShapeDtypeStruct((KK, n_pad), out_dtype),
        grid_spec=pltpu.PrefetchScalarGridSpec(
            num_scalar_prefetch=0,
            grid=(n_pad // tn,),
            in_specs=[pl.BlockSpec((8, tn), lambda i: (0, i))] + [const(a) for a in net_w],
            out_specs=pl.BlockSpec((KK, tn), lambda i: (0, i))),
        compiler_params=pltpu.CompilerParams(dimension_semantics=("parallel",)),
    )(params, *net_w)


# ----------------------------------------------------------------------------
# Plain-JAX glue (the torch.no_grad preprocessing + parameter setup)
# ----------------------------------------------------------------------------
def projective_grid(sizes, m, eps_x=0.0, eps_y=0.0):
    h, w = sizes
    ys, xs = jnp.meshgrid(jnp.arange(h, dtype=jnp.float32),
                          jnp.arange(w, dtype=jnp.float32), indexing="ij")
    xs = xs.reshape(-1) + eps_x
    ys = ys.reshape(-1) + eps_y
    hom = jnp.stack([xs, ys, jnp.ones_like(xs)], axis=0)      # (3, H*W)
    warped = m @ hom
    return jnp.stack([warped[0] / warped[2], warped[1] / warped[2]], axis=0)  # (2, H*W)


def get_transform(m_inverse, sizes, yi):
    p_l = projective_grid(sizes, m_inverse, eps_x=-0.5)
    p_r = projective_grid(sizes, m_inverse, eps_x=0.5)
    p_t = projective_grid(sizes, m_inverse, eps_y=-0.5)
    p_b = projective_grid(sizes, m_inverse, eps_y=0.5)
    dx = p_r[:, yi] - p_l[:, yi]                              # (2, N)
    dy = p_b[:, yi] - p_t[:, yi]
    return dx, dy


def _prepare_params(m_inverse, sizes, grid, yi, n_pad):
    """(8, n_pad) lane-dense per-position scalars built with a single stack + one pad concat.

    The padded tail gets a benign identity Jacobian (dx0 = dy1 = 1) so the kernel math stays
    finite there; the padded columns are sliced away before returning.
    """
    pos = grid + 1.0 - OFFSET                                 # (2, N)
    pos_frac = pos - jnp.floor(pos)
    dx, dy = get_transform(m_inverse, sizes, yi)
    n = grid.shape[1]
    zeros = jnp.zeros((1, n), jnp.float32)
    body = jnp.concatenate(
        [dx[0:1], dx[1:2], dy[0:1], dy[1:2], pos_frac[0:1], pos_frac[1:2], zeros, zeros],
        axis=0).astype(jnp.float32)                           # (8, N)
    if n_pad > n:
        pad_col = jnp.array([1., 0., 0., 1., 0., 0., 0., 0.], jnp.float32).reshape(8, 1)
        body = jnp.concatenate([body, jnp.broadcast_to(pad_col, (8, n_pad - n))], axis=1)
    return body


def _prep_net_weights(mlp_params, mxu_dtype=jnp.bfloat16):
    """Transpose the MLP params for the lane-dense kernel (weights in MXU dtype, biases f32).

    w1 / w3 / b3 stay fused along the sublane axis: w1 columns ordered [x taps | y taps],
    w3 rows / b3 rows ordered [weight_x | weight_y].
    """
    w1, b1, w2, b2, w3, b3 = mlp_params
    w1f = w1.T.astype(mxu_dtype)                              # (nf, 2*KK)
    b1c = b1.reshape(-1, 1).astype(jnp.float32)               # (nf, 1)
    w2t = w2.T.astype(mxu_dtype)                              # (nf, nf)
    b2c = b2.reshape(-1, 1).astype(jnp.float32)               # (nf, 1)
    w3f = w3.T.astype(mxu_dtype)                              # (2*KK, nf)
    b3c = b3.reshape(-1, 1).astype(jnp.float32)               # (2*KK, 1)
    return (w1f, b1c, w2t, b2c, w3f, b3c)


def kernel_estimator_forward(m_inverse, sizes, grid, yi, mlp_params=None, net=False,
                             max_tn=8192, num_cores=1, mxu_dtype=jnp.bfloat16,
                             out_dtype=jnp.float32, torch_layout=True):
    n = grid.shape[1]
    tn, n_pad = _tiling(n, max_tn, num_cores)
    params = _prepare_params(m_inverse, sizes, grid, yi, n_pad)
    if net:
        net_w = _prep_net_weights(mlp_params, mxu_dtype)
        out_t = _run_net(params, net_w, tn, out_dtype)
    else:
        out_t = _run_cubic(params, tn, out_dtype)
    out_t = out_t[:, :n]
    if torch_layout:
        # (N, K*K) like the torch module.  For large N prefer torch_layout=False and consume the
        # lane-dense (K*K, N) slab directly: the transpose is a lane-sparse extra HBM round trip.
        return out_t.T
    return out_t


def init_mlp(key):
    """Deterministic init matching the shapes of the default self.net (dw=1, no_mul=False):
    Linear(2K^2 -> n_feats), ReLU, Linear(n_feats -> n_feats), ReLU, Linear(n_feats -> 2K^2)."""
    dims = [(2 * KK, N_FEATS), (N_FEATS, N_FEATS), (N_FEATS, 2 * KK)]
    params = []
    for fin, fout in dims:
        key, kw, kb = jax.random.split(key, 3)
        bound = fin ** -0.5
        w = jax.random.uniform(kw, (fin, fout), jnp.float32, -bound, bound)
        b = jax.random.uniform(kb, (1, fout), jnp.float32, -bound, bound)
        params += [w, b]
    return tuple(params)


# ----------------------------------------------------------------------------
# Pure-JAX reference (same transposed math, exact divides)
# ----------------------------------------------------------------------------
def reference_forward_t(params, net_weights=None, net=False):
    x, y = _modulated_taps_t(params, _exact_recip)
    if not net:
        w = _cubic_contribution(x) * _cubic_contribution(y)
        return w / jnp.sum(w, axis=0, keepdims=True)
    w1f, b1c, w2t, b2c, w3f, b3c = net_weights
    xy = jnp.concatenate([x, y], axis=0)
    dt = w1f.dtype
    h = jnp.dot(w1f, xy.astype(dt), preferred_element_type=jnp.float32) + b1c
    h = jnp.maximum(h, 0.0)
    h = jnp.dot(w2t, h.astype(dt), preferred_element_type=jnp.float32) + b2c
    h = jnp.maximum(h, 0.0)
    o = jnp.dot(w3f, h.astype(dt), preferred_element_type=jnp.float32) + b3c
    return o[:KK, :] * o[KK:, :]


if __name__ == "__main__":
    key = jax.random.PRNGKey(0)
    H = W = 16
    sizes = (H, W)
    n = H * W

    # Inverse warp (output->input): anisotropic downscale + shear + mild perspective.
    m_inverse = jnp.array([[1.80, 0.15, 1.30],
                           [-0.10, 2.20, 0.70],
                           [1.0e-4, -2.0e-4, 1.00]], jnp.float32)

    yi = jnp.arange(n, dtype=jnp.int32)                 # all output pixels
    grid = projective_grid(sizes, m_inverse)[:, yi]     # (2, N) warped source positions

    key, kmlp = jax.random.split(key)
    mlp_params = init_mlp(kmlp)

    # Hot paths in Pallas.
    w_cubic = kernel_estimator_forward(m_inverse, sizes, grid, yi, mlp_params, net=False)
    w_net = kernel_estimator_forward(m_inverse, sizes, grid, yi, mlp_params, net=True)
    jax.block_until_ready((w_cubic, w_net))

    # Sanity check against a pure-JAX reference of the same math (exact reciprocals).
    tn, n_pad = _tiling(n)
    params = _prepare_params(m_inverse, sizes, grid, yi, n_pad)
    ref_cubic = reference_forward_t(params, net=False)[:, :n].T
    net_w = _prep_net_weights(mlp_params)
    ref_net = reference_forward_t(params, net_w, net=True)[:, :n].T

    assert w_cubic.shape == (n, KK) and w_net.shape == (n, KK)
    assert bool(jnp.all(jnp.isfinite(w_cubic))) and bool(jnp.all(jnp.isfinite(w_net)))
    assert bool(jnp.allclose(w_cubic, ref_cubic, atol=1e-3, rtol=1e-3)), "cubic path mismatch"
    # net path uses bf16 MXU inputs in both kernel and reference; tolerance covers bf16 rounding.
    assert bool(jnp.allclose(w_net, ref_net, atol=1e-2, rtol=1e-2)), "net path mismatch"

    # Lane-dense output path (no wrapper transpose) must match the torch-layout result.
    w_cubic_ld = kernel_estimator_forward(m_inverse, sizes, grid, yi, mlp_params,
                                          net=False, torch_layout=False)
    assert bool(jnp.allclose(w_cubic_ld.T, w_cubic)), "lane-dense layout mismatch"

    print("KERNEL_OK")
</pallas_src>

<mosaic_0001>
module attributes {stable_mosaic.version = 11 : i64} {
  func.func @_cubic_kernel(%arg0: i32, %arg1: memref<8x256xf32, #tpu.memory_space<vmem>>, %arg2: memref<16x256xf32, #tpu.memory_space<vmem>>) attributes {dimension_semantics = [#tpu.dimension_semantics<parallel>], iteration_bounds = array<i64: 1>, scalar_prefetch = 0 : i64, scratch_operands = 0 : i64, tpu.core_type = #tpu.core_type<tc>, window_params = [{transform_indices = @transform_0, window_bounds = array<i64: 8, 256>}, {transform_indices = @transform_1, window_bounds = array<i64: 16, 256>}]} {
    %c0 = arith.constant 0 : index
    %c0_0 = arith.constant 0 : index
    %0 = vector.load %arg1[%c0, %c0_0] : memref<8x256xf32, #tpu.memory_space<vmem>>, vector<8x256xf32>
    %1 = vector.extract_strided_slice %0 {offsets = [0, 0], sizes = [1, 256], strides = [1, 1]} : vector<8x256xf32> to vector<1x256xf32>
    %2 = vector.extract_strided_slice %0 {offsets = [1, 0], sizes = [1, 256], strides = [1, 1]} : vector<8x256xf32> to vector<1x256xf32>
    %3 = vector.extract_strided_slice %0 {offsets = [2, 0], sizes = [1, 256], strides = [1, 1]} : vector<8x256xf32> to vector<1x256xf32>
    %4 = vector.extract_strided_slice %0 {offsets = [3, 0], sizes = [1, 256], strides = [1, 1]} : vector<8x256xf32> to vector<1x256xf32>
    %5 = vector.extract_strided_slice %0 {offsets = [4, 0], sizes = [1, 256], strides = [1, 1]} : vector<8x256xf32> to vector<1x256xf32>
    %6 = vector.extract_strided_slice %0 {offsets = [5, 0], sizes = [1, 256], strides = [1, 1]} : vector<8x256xf32> to vector<1x256xf32>
    %7 = arith.mulf %1, %4 : vector<1x256xf32>
    %8 = arith.mulf %2, %3 : vector<1x256xf32>
    %9 = arith.subf %7, %8 : vector<1x256xf32>
    %10 = arith.mulf %9, %9 : vector<1x256xf32>
    %11 = tpu.reciprocal %10 {approx = true} : vector<1x256xf32> -> vector<1x256xf32>
    %12 = arith.mulf %10, %11 : vector<1x256xf32>
    %cst = arith.constant 2.000000e+00 : f32
    %13 = vector.broadcast %cst : f32 to vector<1x256xf32>
    %14 = arith.subf %13, %12 : vector<1x256xf32>
    %15 = arith.mulf %11, %14 : vector<1x256xf32>
    %16 = arith.mulf %2, %2 : vector<1x256xf32>
    %17 = arith.mulf %4, %4 : vector<1x256xf32>
    %18 = arith.addf %16, %17 : vector<1x256xf32>
    %19 = arith.mulf %18, %15 : vector<1x256xf32>
    %20 = arith.mulf %1, %1 : vector<1x256xf32>
    %21 = arith.mulf %3, %3 : vector<1x256xf32>
    %22 = arith.addf %20, %21 : vector<1x256xf32>
    %23 = arith.mulf %22, %15 : vector<1x256xf32>
    %24 = arith.mulf %1, %2 : vector<1x256xf32>
    %25 = arith.mulf %3, %4 : vector<1x256xf32>
    %26 = arith.addf %24, %25 : vector<1x256xf32>
    %cst_1 = arith.constant 2.000000e+00 : f32
    %27 = vector.broadcast %cst_1 : f32 to vector<1x256xf32>
    %28 = arith.mulf %27, %26 : vector<1x256xf32>
    %29 = arith.mulf %28, %15 : vector<1x256xf32>
    %30 = arith.subf %23, %19 : vector<1x256xf32>
    %31 = arith.mulf %29, %29 : vector<1x256xf32>
    %32 = arith.mulf %30, %30 : vector<1x256xf32>
    %33 = arith.addf %31, %32 : vector<1x256xf32>
    %cst_2 = arith.constant 0.000000e+00 : f32
    %34 = vector.broadcast %cst_2 : f32 to vector<1x256xf32>
    %35 = arith.cmpf ogt, %33, %34 : vector<1x256xf32>
    %cst_3 = arith.constant 1.000000e+00 : f32
    %36 = vector.broadcast %cst_3 : f32 to vector<1x256xf32>
    %37 = arith.select %35, %33, %36 : vector<1x256xi1>, vector<1x256xf32>
    %38 = math.rsqrt %37 : vector<1x256xf32>
    %39 = arith.mulf %30, %38 : vector<1x256xf32>
    %cst_4 = arith.constant 1.000000e+00 : f32
    %40 = vector.broadcast %cst_4 : f32 to vector<1x256xf32>
    %41 = arith.select %35, %39, %40 : vector<1x256xi1>, vector<1x256xf32>
    %42 = arith.mulf %29, %38 : vector<1x256xf32>
    %cst_5 = arith.constant 0.000000e+00 : f32
    %43 = vector.broadcast %cst_5 : f32 to vector<1x256xf32>
    %44 = arith.select %35, %42, %43 : vector<1x256xi1>, vector<1x256xf32>
    %cst_6 = arith.constant 1.000000e+00 : f32
    %45 = vector.broadcast %cst_6 : f32 to vector<1x256xf32>
    %46 = arith.addf %45, %41 : vector<1x256xf32>
    %cst_7 = arith.constant 5.000000e-01 : f32
    %47 = vector.broadcast %cst_7 : f32 to vector<1x256xf32>
    %48 = arith.mulf %47, %46 : vector<1x256xf32>
    %cst_8 = arith.constant 0.000000e+00 : f32
    %49 = vector.broadcast %cst_8 : f32 to vector<1x256xf32>
    %50 = arith.maximumf %48, %49 : vector<1x256xf32>
    %51 = math.sqrt %50 : vector<1x256xf32>
    %cst_9 = arith.constant 0.000000e+00 : f32
    %52 = vector.broadcast %cst_9 : f32 to vector<1x256xf32>
    %53 = arith.cmpf oge, %44, %52 : vector<1x256xf32>
    %cst_10 = arith.constant 1.000000e+00 : f32
    %cst_11 = arith.constant -1.000000e+00 : f32
    %54 = vector.broadcast %cst_10 : f32 to vector<1x256xf32>
    %55 = vector.broadcast %cst_11 : f32 to vector<1x256xf32>
    %56 = arith.select %53, %54, %55 : vector<1x256xi1>, vector<1x256xf32>
    %cst_12 = arith.constant 1.000000e+00 : f32
    %57 = vector.broadcast %cst_12 : f32 to vector<1x256xf32>
    %58 = arith.subf %57, %41 : vector<1x256xf32>
    %cst_13 = arith.constant 5.000000e-01 : f32
    %59 = vector.broadcast %cst_13 : f32 to vector<1x256xf32>
    %60 = arith.mulf %59, %58 : vector<1x256xf32>
    %cst_14 = arith.constant 0.000000e+00 : f32
    %61 = vector.broadcast %cst_14 : f32 to vector<1x256xf32>
    %62 = arith.maximumf %60, %61 : vector<1x256xf32>
    %63 = math.sqrt %62 : vector<1x256xf32>
    %64 = arith.mulf %56, %63 : vector<1x256xf32>
    %65 = arith.mulf %51, %51 : vector<1x256xf32>
    %cst_15 = arith.constant 2.000000e+00 : f32
    %66 = vector.broadcast %cst_15 : f32 to vector<1x256xf32>
    %67 = arith.mulf %66, %65 : vector<1x256xf32>
    %cst_16 = arith.constant 1.000000e+00 : f32
    %68 = vector.broadcast %cst_16 : f32 to vector<1x256xf32>
    %69 = arith.subf %67, %68 : vector<1x256xf32>
    %70 = arith.addf %19, %23 : vector<1x256xf32>
    %71 = arith.mulf %70, %65 : vector<1x256xf32>
    %72 = arith.subf %71, %23 : vector<1x256xf32>
    %73 = tpu.reciprocal %72 {approx = true} : vector<1x256xf32> -> vector<1x256xf32>
    %74 = arith.mulf %72, %73 : vector<1x256xf32>
    %cst_17 = arith.constant 2.000000e+00 : f32
    %75 = vector.broadcast %cst_17 : f32 to vector<1x256xf32>
    %76 = arith.subf %75, %74 : vector<1x256xf32>
    %77 = arith.mulf %73, %76 : vector<1x256xf32>
    %78 = arith.mulf %69, %77 : vector<1x256xf32>
    %cst_18 = arith.constant 1.000000e+00 : f32
    %79 = vector.broadcast %cst_18 : f32 to vector<1x256xf32>
    %80 = arith.maximumf %78, %79 : vector<1x256xf32>
    %81 = math.rsqrt %80 : vector<1x256xf32>
    %82 = arith.subf %71, %19 : vector<1x256xf32>
    %83 = tpu.reciprocal %82 {approx = true} : vector<1x256xf32> -> vector<1x256xf32>
    %84 = arith.mulf %82, %83 : vector<1x256xf32>
    %cst_19 = arith.constant 2.000000e+00 : f32
    %85 = vector.broadcast %cst_19 : f32 to vector<1x256xf32>
    %86 = arith.subf %85, %84 : vector<1x256xf32>
    %87 = arith.mulf %83, %86 : vector<1x256xf32>
    %88 = arith.mulf %69, %87 : vector<1x256xf32>
    %cst_20 = arith.constant 1.000000e+00 : f32
    %89 = vector.broadcast %cst_20 : f32 to vector<1x256xf32>
    %90 = arith.maximumf %88, %89 : vector<1x256xf32>
    %91 = math.rsqrt %90 : vector<1x256xf32>
    %92 = arith.subf %81, %91 : vector<1x256xf32>
    %93 = arith.mulf %92, %65 : vector<1x256xf32>
    %94 = arith.addf %91, %93 : vector<1x256xf32>
    %95 = arith.subf %81, %93 : vector<1x256xf32>
    %96 = arith.mulf %51, %64 : vector<1x256xf32>
    %97 = arith.mulf %96, %92 : vector<1x256xf32>
    %98 = tpu.iota {dimensions = array<i32: 0>} : vector<16x1xi32>
    %99 = arith.sitofp %98 : vector<16x1xi32> to vector<16x1xf32>
    %cst_21 = arith.constant 2.500000e-01 : f32
    %100 = vector.broadcast %cst_21 : f32 to vector<16x1xf32>
    %101 = arith.mulf %99, %100 : vector<16x1xf32>
    %102 = math.floor %101 : vector<16x1xf32>
    %cst_22 = arith.constant 4.000000e+00 : f32
    %103 = vector.broadcast %cst_22 : f32 to vector<16x1xf32>
    %104 = arith.mulf %103, %102 : vector<16x1xf32>
    %105 = arith.subf %99, %104 : vector<16x1xf32>
    %cst_23 = arith.constant -1.000000e+00 : f32
    %106 = vector.broadcast %cst_23 : f32 to vector<16x1xf32>
    %107 = arith.addf %106, %105 : vector<16x1xf32>
    %cst_24 = arith.constant -1.000000e+00 : f32
    %108 = vector.broadcast %cst_24 : f32 to vector<16x1xf32>
    %109 = arith.addf %108, %102 : vector<16x1xf32>
    %110 = vector.broadcast %107 : vector<16x1xf32> to vector<16x256xf32>
    %111 = vector.broadcast %5 : vector<1x256xf32> to vector<16x256xf32>
    %112 = arith.subf %110, %111 : vector<16x256xf32>
    %113 = vector.broadcast %109 : vector<16x1xf32> to vector<16x256xf32>
    %114 = vector.broadcast %6 : vector<1x256xf32> to vector<16x256xf32>
    %115 = arith.subf %113, %114 : vector<16x256xf32>
    %116 = vector.broadcast %94 : vector<1x256xf32> to vector<16x256xf32>
    %117 = arith.mulf %116, %112 : vector<16x256xf32>
    %118 = vector.broadcast %97 : vector<1x256xf32> to vector<16x256xf32>
    %119 = arith.mulf %118, %115 : vector<16x256xf32>
    %120 = arith.addf %117, %119 : vector<16x256xf32>
    %121 = vector.broadcast %95 : vector<1x256xf32> to vector<16x256xf32>
    %122 = arith.mulf %121, %115 : vector<16x256xf32>
    %123 = vector.broadcast %97 : vector<1x256xf32> to vector<16x256xf32>
    %124 = arith.mulf %123, %112 : vector<16x256xf32>
    %125 = arith.addf %122, %124 : vector<16x256xf32>
    %126 = math.absf %120 : vector<16x256xf32>
    %127 = arith.mulf %126, %126 : vector<16x256xf32>
    %128 = arith.mulf %126, %127 : vector<16x256xf32>
    %cst_25 = arith.constant 1.000000e+00 : f32
    %129 = vector.broadcast %cst_25 : f32 to vector<16x256xf32>
    %130 = arith.cmpf ole, %126, %129 : vector<16x256xf32>
    %131 = arith.extui %130 : vector<16x256xi1> to vector<16x256xi32>
    %132 = arith.sitofp %131 : vector<16x256xi32> to vector<16x256xf32>
    %cst_26 = arith.constant 1.000000e+00 : f32
    %133 = vector.broadcast %cst_26 : f32 to vector<16x256xf32>
    %134 = arith.cmpf ogt, %126, %133 : vector<16x256xf32>
    %cst_27 = arith.constant 2.000000e+00 : f32
    %135 = vector.broadcast %cst_27 : f32 to vector<16x256xf32>
    %136 = arith.cmpf ole, %126, %135 : vector<16x256xf32>
    %137 = arith.andi %134, %136 : vector<16x256xi1>
    %138 = arith.extui %137 : vector<16x256xi1> to vector<16x256xi32>
    %139 = arith.sitofp %138 : vector<16x256xi32> to vector<16x256xf32>
    %cst_28 = arith.constant 1.500000e+00 : f32
    %140 = vector.broadcast %cst_28 : f32 to vector<16x256xf32>
    %141 = arith.mulf %140, %128 : vector<16x256xf32>
    %cst_29 = arith.constant 2.500000e+00 : f32
    %142 = vector.broadcast %cst_29 : f32 to vector<16x256xf32>
    %143 = arith.mulf %142, %127 : vector<16x256xf32>
    %144 = arith.subf %141, %143 : vector<16x256xf32>
    %cst_30 = arith.constant 1.000000e+00 : f32
    %145 = vector.broadcast %cst_30 : f32 to vector<16x256xf32>
    %146 = arith.addf %144, %145 : vector<16x256xf32>
    %147 = arith.mulf %146, %132 : vector<16x256xf32>
    %cst_31 = arith.constant -5.000000e-01 : f32
    %148 = vector.broadcast %cst_31 : f32 to vector<16x256xf32>
    %149 = arith.mulf %148, %128 : vector<16x256xf32>
    %cst_32 = arith.constant -2.500000e+00 : f32
    %150 = vector.broadcast %cst_32 : f32 to vector<16x256xf32>
    %151 = arith.mulf %150, %127 : vector<16x256xf32>
    %152 = arith.subf %149, %151 : vector<16x256xf32>
    %cst_33 = arith.constant -4.000000e+00 : f32
    %153 = vector.broadcast %cst_33 : f32 to vector<16x256xf32>
    %154 = arith.mulf %153, %126 : vector<16x256xf32>
    %155 = arith.addf %152, %154 : vector<16x256xf32>
    %cst_34 = arith.constant -2.000000e+00 : f32
    %156 = vector.broadcast %cst_34 : f32 to vector<16x256xf32>
    %157 = arith.subf %155, %156 : vector<16x256xf32>
    %158 = arith.mulf %157, %139 : vector<16x256xf32>
    %159 = arith.addf %147, %158 : vector<16x256xf32>
    %160 = math.absf %125 : vector<16x256xf32>
    %161 = arith.mulf %160, %160 : vector<16x256xf32>
    %162 = arith.mulf %160, %161 : vector<16x256xf32>
    %cst_35 = arith.constant 1.000000e+00 : f32
    %163 = vector.broadcast %cst_35 : f32 to vector<16x256xf32>
    %164 = arith.cmpf ole, %160, %163 : vector<16x256xf32>
    %165 = arith.extui %164 : vector<16x256xi1> to vector<16x256xi32>
    %166 = arith.sitofp %165 : vector<16x256xi32> to vector<16x256xf32>
    %cst_36 = arith.constant 1.000000e+00 : f32
    %167 = vector.broadcast %cst_36 : f32 to vector<16x256xf32>
    %168 = arith.cmpf ogt, %160, %167 : vector<16x256xf32>
    %cst_37 = arith.constant 2.000000e+00 : f32
    %169 = vector.broadcast %cst_37 : f32 to vector<16x256xf32>
    %170 = arith.cmpf ole, %160, %169 : vector<16x256xf32>
    %171 = arith.andi %168, %170 : vector<16x256xi1>
    %172 = arith.extui %171 : vector<16x256xi1> to vector<16x256xi32>
    %173 = arith.sitofp %172 : vector<16x256xi32> to vector<16x256xf32>
    %cst_38 = arith.constant 1.500000e+00 : f32
    %174 = vector.broadcast %cst_38 : f32 to vector<16x256xf32>
    %175 = arith.mulf %174, %162 : vector<16x256xf32>
    %cst_39 = arith.constant 2.500000e+00 : f32
    %176 = vector.broadcast %cst_39 : f32 to vector<16x256xf32>
    %177 = arith.mulf %176, %161 : vector<16x256xf32>
    %178 = arith.subf %175, %177 : vector<16x256xf32>
    %cst_40 = arith.constant 1.000000e+00 : f32
    %179 = vector.broadcast %cst_40 : f32 to vector<16x256xf32>
    %180 = arith.addf %178, %179 : vector<16x256xf32>
    %181 = arith.mulf %180, %166 : vector<16x256xf32>
    %cst_41 = arith.constant -5.000000e-01 : f32
    %182 = vector.broadcast %cst_41 : f32 to vector<16x256xf32>
    %183 = arith.mulf %182, %162 : vector<16x256xf32>
    %cst_42 = arith.constant -2.500000e+00 : f32
    %184 = vector.broadcast %cst_42 : f32 to vector<16x256xf32>
    %185 = arith.mulf %184, %161 : vector<16x256xf32>
    %186 = arith.subf %183, %185 : vector<16x256xf32>
    %cst_43 = arith.constant -4.000000e+00 : f32
    %187 = vector.broadcast %cst_43 : f32 to vector<16x256xf32>
    %188 = arith.mulf %187, %160 : vector<16x256xf32>
    %189 = arith.addf %186, %188 : vector<16x256xf32>
    %cst_44 = arith.constant -2.000000e+00 : f32
    %190 = vector.broadcast %cst_44 : f32 to vector<16x256xf32>
    %191 = arith.subf %189, %190 : vector<16x256xf32>
    %192 = arith.mulf %191, %173 : vector<16x256xf32>
    %193 = arith.addf %181, %192 : vector<16x256xf32>
    %194 = arith.mulf %159, %193 : vector<16x256xf32>
    %cst_45 = arith.constant dense<0.000000e+00> : vector<256xf32>
    %195 = vector.multi_reduction <add>, %194, %cst_45 [0] : vector<16x256xf32> to vector<256xf32>
    %196 = vector.shape_cast %195 : vector<256xf32> to vector<1x256xf32>
    %197 = tpu.reciprocal %196 {approx = true} : vector<1x256xf32> -> vector<1x256xf32>
    %198 = arith.mulf %196, %197 : vector<1x256xf32>
    %cst_46 = arith.constant 2.000000e+00 : f32
    %199 = vector.broadcast %cst_46 : f32 to vector<1x256xf32>
    %200 = arith.subf %199, %198 : vector<1x256xf32>
    %201 = arith.mulf %197, %200 : vector<1x256xf32>
    %202 = vector.broadcast %201 : vector<1x256xf32> to vector<16x256xf32>
    %203 = arith.mulf %194, %202 : vector<16x256xf32>
    %c0_47 = arith.constant 0 : index
    %c0_48 = arith.constant 0 : index
    %204 = vector.load %arg2[%c0_47, %c0_48] : memref<16x256xf32, #tpu.memory_space<vmem>>, vector<16x256xf32>
    tpu.vector_store %arg2[%c0_47, %c0_48], %203 {strides = array<i32>} : memref<16x256xf32, #tpu.memory_space<vmem>>, vector<16x256xf32>,
    return
  }
  func.func @transform_0(%arg0: i32) -> (i32, i32) {
    %c0_i32 = arith.constant 0 : i32
    %c0_i32_0 = arith.constant 0 : i32
    return %c0_i32, %arg0 : i32, i32
  }
  func.func @transform_1(%arg0: i32) -> (i32, i32) {
    %c0_i32 = arith.constant 0 : i32
    %c0_i32_0 = arith.constant 0 : i32
    return %c0_i32, %arg0 : i32, i32
  }
}

</mosaic_0001>

<llo_original>
// kernel: tpu_custom_call.1
$region0: #{tpu_custom_call.1}
  #allocation0 [shape = 'u32[]', space=smem, size = 0x4, offset = 0x4, fixed_abs, tag = 'smem constant byte address 0x4 - core index']
  #allocation1 [shape = 'u32[144,128]{1,0:T(1,128)}', space=vmem, size = 0x12000, scoped, tag = 'internal scratch']
  %s0 = inlined_call_operand.hbm [shape: f32[8,256], index: 0, kind: input, shape index: {}]
  %s1 = inlined_call_operand.hbm [shape: f32[16,256], index: 1, kind: output, shape index: {}]
  %s2 = sld [smem:[#allocation0]]
  $region18: #{tpu_custom_call.1} parent=0
    _
  %s4 = ssub.s32 1, %s2
  %s5 = scalar_select 0, %s4, %s2
  $region1: #{tpu_custom_call.1} parent=0
    #allocation2 [shape = 'u8[8192]{0}', space=vmem, size = 0x2000, scoped, tag = 'input window, operand 0, single buffered']
    #allocation3 [shape = 's32[1]{0}', space=sflag, size = 0x4, scoped, tag = 'scoped memory for tpu_custom_call.1']
    #allocation4 [shape = 's32[1]{0}', space=sflag, size = 0x4, scoped, tag = 'scoped memory for tpu_custom_call.1']
    #allocation5 [shape = 'u8[16384]{0}', space=vmem, size = 0x4000, scoped, tag = 'output window, operand 0, single buffered']
    %6 = vsyncpa [#allocation3], 0
    %7 = vsyncpa [#allocation4], 0
    // Predicated region
    $region2: #{tpu_custom_call.1} parent=1 // pred_check
      _
    $region3: #{tpu_custom_call.1} parent=1 // pred_check_branch
      %9 = sbr.rel (0) target = $region5
    $region4: #{tpu_custom_call.1} parent=1 // pred_region
      %s11 = ssub.s32 256, 256
      %12 = vsyncadd [#allocation3], %s11
      %s14 = sshll.u32 [#allocation2], 4
      %s15 = int_to_ptr.vmem [resolvable:$true] %s14
      %17 = dma.hbm_to_vmem [thread:$0]  %s0, 256, %s15, [#allocation3]
    $region5: #{tpu_custom_call.1} parent=1 // pred_fallthru
      _
    // Predicated region
    $region6: #{tpu_custom_call.1} parent=1 // pred_check
      _
    $region7: #{tpu_custom_call.1} parent=1 // pred_check_branch
      %19 = sbr.rel (0) target = $region9
    $region8: #{tpu_custom_call.1} parent=1 // pred_region
      %20 = dma.done [#allocation3], 256
    $region9: #{tpu_custom_call.1} parent=1 // pred_fallthru
      _
    %v21 = vld [vmem:[#allocation2] sm:$0xff]
    %v22 = vld [vmem:[#allocation2 + $0x8] sm:$0xff]
    %v25 = vrot.slane %v21, 3
    %v26 = vrot.slane %v22, 3
    %v29 = vmul.f32 %v21, %v25
    %v30 = vmul.f32 %v22, %v26
    %v31 = vrot.slane %v21, 1
    %v32 = vrot.slane %v22, 1
    %v35 = vmul.f32 %v21, %v31
    %v36 = vmul.f32 %v22, %v32
    %v39 = vrot.slane %v35, 1
    %v40 = vrot.slane %v36, 1
    %v43 = vsub.f32 %v29, %v39
    %v44 = vsub.f32 %v30, %v40
    %v45 = vmul.f32 %v43, %v43
    %v46 = vmul.f32 %v44, %v44
    %v47 = vrcp.pop %v45
    %v48 = vrcp.pop %v46
    %v49 = vmul.f32 %v45, %v47
    %v50 = vmul.f32 %v46, %v48
    %v51 = vsub.f32 2.0, %v49
    %v52 = vsub.f32 2.0, %v50
    %v53 = vmul.f32 %v47, %v51
    %v54 = vmul.f32 %v48, %v52
    %v55 = vmul.f32 %v21, %v21
    %v56 = vmul.f32 %v22, %v22
    %v59 = vrot.slane %v55, 2
    %v60 = vrot.slane %v56, 2
    %v63 = vadd.f32 %v55, %v59
    %v64 = vadd.f32 %v56, %v60
    %v67 = vrot.slane %v53, 7
    %v68 = vrot.slane %v54, 7
    %v71 = vmul.f32 %v63, %v67
    %v72 = vmul.f32 %v64, %v68
    %v73 = vmul.f32 %v63, %v53
    %v74 = vmul.f32 %v64, %v54
    %v75 = vrot.slane %v35, 2
    %v76 = vrot.slane %v36, 2
    %v79 = vadd.f32 %v35, %v75
    %v80 = vadd.f32 %v36, %v76
    %v81 = vmul.f32 %v79, 2.0
    %v82 = vmul.f32 %v80, 2.0
    %v83 = vmul.f32 %v81, %v53
    %v84 = vmul.f32 %v82, %v54
    %v87 = vrot.slane %v71, 1
    %v88 = vrot.slane %v72, 1
    %v91 = vsub.f32 %v73, %v87
    %v92 = vsub.f32 %v74, %v88
    %v93 = vmul.f32 %v83, %v83
    %v94 = vmul.f32 %v84, %v84
    %v95 = vmul.f32 %v91, %v91
    %v96 = vmul.f32 %v92, %v92
    %v97 = vadd.f32 %v93, %v95
    %v98 = vadd.f32 %v94, %v96
    %vm99 = vcmp.gt.f32.partialorder %v97, 0.0
    %vm100 = vcmp.gt.f32.partialorder %v98, 0.0
    %v101 = vsel %vm99, %v97, 1.0
    %v102 = vsel %vm100, %v98, 1.0
    %v103 = vrsqrt.pop %v101
    %v104 = vrsqrt.pop %v102
    %v105 = vmul.f32 %v91, %v103
    %v106 = vmul.f32 %v92, %v104
    %v107 = vsel %vm99, %v105, 1.0
    %v108 = vsel %vm100, %v106, 1.0
    %v109 = vmul.f32 %v83, %v103
    %v110 = vmul.f32 %v84, %v104
    %v111 = vsel %vm99, %v109, 0.0
    %v112 = vsel %vm100, %v110, 0.0
    %v113 = vadd.f32 %v107, 1.0
    %v114 = vadd.f32 %v108, 1.0
    %v115 = vmul.f32 %v113, 0.5
    %v116 = vmul.f32 %v114, 0.5
    %v117 = vmax.f32 %v115, 0.0
    %v118 = vmax.f32 %v116, 0.0
    %v119 = vrsqrt.pop %v117
    %v120 = vmul.f32 %v117, %v119
    %vm121 = vcmp.eq.f32.partialorder %v117, inf
    %v122 = vsel %vm121, %v117, %v120
    %vm123 = vcmp.eq.f32.partialorder %v117, 0.0
    %v124 = vand.u32 %v117, 2147483648
    %v125 = vsel %vm123, %v124, %v122
    %v126 = vrsqrt.pop %v118
    %v127 = vmul.f32 %v118, %v126
    %vm128 = vcmp.eq.f32.partialorder %v118, inf
    %v129 = vsel %vm128, %v118, %v127
    %vm130 = vcmp.eq.f32.partialorder %v118, 0.0
    %v131 = vand.u32 %v118, 2147483648
    %v132 = vsel %vm130, %v131, %v129
    %vm133 = vcmp.ge.f32.partialorder %v111, 0.0
    %vm134 = vcmp.ge.f32.partialorder %v112, 0.0
    %v135 = vsel %vm133, 1.0, -1.0
    %v136 = vsel %vm134, 1.0, -1.0
    %v137 = vsub.f32 1.0, %v107
    %v138 = vsub.f32 1.0, %v108
    %v139 = vmul.f32 %v137, 0.5
    %v140 = vmul.f32 %v138, 0.5
    %v141 = vmax.f32 %v139, 0.0
    %v142 = vmax.f32 %v140, 0.0
    %v143 = vrsqrt.pop %v141
    %v144 = vmul.f32 %v141, %v143
    %vm145 = vcmp.eq.f32.partialorder %v141, inf
    %v146 = vsel %vm145, %v141, %v144
    %vm147 = vcmp.eq.f32.partialorder %v141, 0.0
    %v148 = vand.u32 %v141, 2147483648
    %v149 = vsel %vm147, %v148, %v146
    %v150 = vrsqrt.pop %v142
    %v151 = vmul.f32 %v142, %v150
    %vm152 = vcmp.eq.f32.partialorder %v142, inf
    %v153 = vsel %vm152, %v142, %v151
    %vm154 = vcmp.eq.f32.partialorder %v142, 0.0
    %v155 = vand.u32 %v142, 2147483648
    %v156 = vsel %vm154, %v155, %v153
    %v157 = vmul.f32 %v135, %v149
    %v158 = vmul.f32 %v136, %v156
    %v159 = vmul.f32 %v125, %v125
    %v160 = vmul.f32 %v132, %v132
    %v161 = vmul.f32 %v159, 2.0
    %v162 = vmul.f32 %v160, 2.0
    %v163 = vsub.f32 %v161, 1.0
    %v164 = vsub.f32 %v162, 1.0
    %v167 = vrot.slane %v73, 7
    %v168 = vrot.slane %v74, 7
    %v171 = vadd.f32 %v71, %v167
    %v172 = vadd.f32 %v72, %v168
    %v175 = vrot.slane %v159, 7
    %v176 = vrot.slane %v160, 7
    %v179 = vmul.f32 %v171, %v175
    %v180 = vmul.f32 %v172, %v176
    %v181 = vsub.f32 %v179, %v167
    %v182 = vsub.f32 %v180, %v168
    %v183 = vrcp.pop %v181
    %v184 = vrcp.pop %v182
    %v185 = vmul.f32 %v181, %v183
    %v186 = vmul.f32 %v182, %v184
    %v187 = vsub.f32 2.0, %v185
    %v188 = vsub.f32 2.0, %v186
    %v189 = vmul.f32 %v183, %v187
    %v190 = vmul.f32 %v184, %v188
    %v193 = vrot.slane %v189, 1
    %v194 = vrot.slane %v190, 1
    %v197 = vmul.f32 %v163, %v193
    %v198 = vmul.f32 %v164, %v194
    %v199 = vmax.f32 %v197, 1.0
    %v200 = vmax.f32 %v198, 1.0
    %v201 = vrsqrt.pop %v199
    %v202 = vrsqrt.pop %v200
    %v203 = vsub.f32 %v179, %v71
    %v204 = vsub.f32 %v180, %v72
    %v205 = vrcp.pop %v203
    %v206 = vrcp.pop %v204
    %v207 = vmul.f32 %v203, %v205
    %v208 = vmul.f32 %v204, %v206
    %v209 = vsub.f32 2.0, %v207
    %v210 = vsub.f32 2.0, %v208
    %v211 = vmul.f32 %v205, %v209
    %v212 = vmul.f32 %v206, %v210
    %v215 = vrot.slane %v211, 1
    %v216 = vrot.slane %v212, 1
    %v219 = vmul.f32 %v163, %v215
    %v220 = vmul.f32 %v164, %v216
    %v221 = vmax.f32 %v219, 1.0
    %v222 = vmax.f32 %v220, 1.0
    %v223 = vrsqrt.pop %v221
    %v224 = vrsqrt.pop %v222
    %v225 = vsub.f32 %v201, %v223
    %v226 = vsub.f32 %v202, %v224
    %v227 = vmul.f32 %v225, %v159
    %v228 = vmul.f32 %v226, %v160
    %v229 = vadd.f32 %v223, %v227
    %v230 = vadd.f32 %v224, %v228
    %v231 = vsub.f32 %v201, %v227
    %v232 = vsub.f32 %v202, %v228
    %v233 = vmul.f32 %v125, %v157
    %v234 = vmul.f32 %v132, %v158
    %v235 = vmul.f32 %v233, %v225
    %v236 = vmul.f32 %v234, %v226
    %v237 = vlaneseq
    %v238 = vshrl.u32 %v237, 7
    %v239 = vadd.s32 %v238, 8
    %v240 = vcvt.s32.f32 %v238
    %v241 = vcvt.s32.f32 %v239
    %v242 = vmul.f32 %v240, 0.25
    %v243 = vmul.f32 %v241, 0.25
    %v244 = vfloor.f32 %v242
    %v245 = vfloor.f32 %v243
    %v246 = vmul.f32 %v244, 4.0
    %v247 = vmul.f32 %v245, 4.0
    %v248 = vsub.f32 %v240, %v246
    %v249 = vsub.f32 %v241, %v247
    %v250 = vadd.f32 %v248, -1.0
    %v251 = vadd.f32 %v249, -1.0
    %v252 = vadd.f32 %v244, -1.0
    %v253 = vadd.f32 %v245, -1.0
    %v254 = vlaneseq
    %v255 = vshrl.u32 %v254, 7
    %v256 = vsub.s32 4, %v255
    %v257 = vrot.slane %v21, %v256
    %v258 = vlaneseq
    %v259 = vshrl.u32 %v258, 7
    %v260 = vsub.s32 4, %v259
    %v261 = vrot.slane %v22, %v260
    %v262 = vsub.f32 %v250, %v257
    %v263 = vsub.f32 %v250, %v261
    %v264 = vsub.f32 %v251, %v257
    %v265 = vsub.f32 %v251, %v261
    %v266 = vlaneseq
    %v267 = vshrl.u32 %v266, 7
    %v268 = vsub.s32 5, %v267
    %v269 = vrot.slane %v21, %v268
    %v270 = vlaneseq
    %v271 = vshrl.u32 %v270, 7
    %v272 = vsub.s32 5, %v271
    %v273 = vrot.slane %v22, %v272
    %v274 = vsub.f32 %v252, %v269
    %v275 = vsub.f32 %v252, %v273
    %v276 = vsub.f32 %v253, %v269
    %v277 = vsub.f32 %v253, %v273
    %v278 = vlaneseq
    %v279 = vshrl.u32 %v278, 7
    %v280 = vsub.s32 0, %v279
    %v281 = vrot.slane %v229, %v280
    %v282 = vlaneseq
    %v283 = vshrl.u32 %v282, 7
    %v284 = vsub.s32 0, %v283
    %v285 = vrot.slane %v230, %v284
    %v286 = vmul.f32 %v281, %v262
    %v287 = vmul.f32 %v285, %v263
    %v288 = vmul.f32 %v281, %v264
    %v289 = vmul.f32 %v285, %v265
    %v290 = vlaneseq
    %v291 = vshrl.u32 %v290, 7
    %v292 = vsub.s32 0, %v291
    %v293 = vrot.slane %v235, %v292
    %v294 = vlaneseq
    %v295 = vshrl.u32 %v294, 7
    %v296 = vsub.s32 0, %v295
    %v297 = vrot.slane %v236, %v296
    %v298 = vmul.f32 %v293, %v274
    %v299 = vmul.f32 %v297, %v275
    %v300 = vmul.f32 %v293, %v276
    %v301 = vmul.f32 %v297, %v277
    %v302 = vadd.f32 %v286, %v298
    %v303 = vadd.f32 %v287, %v299
    %v304 = vadd.f32 %v288, %v300
    %v305 = vadd.f32 %v289, %v301
    %v306 = vlaneseq
    %v307 = vshrl.u32 %v306, 7
    %v308 = vsub.s32 0, %v307
    %v309 = vrot.slane %v231, %v308
    %v310 = vlaneseq
    %v311 = vshrl.u32 %v310, 7
    %v312 = vsub.s32 0, %v311
    %v313 = vrot.slane %v232, %v312
    %v314 = vmul.f32 %v309, %v274
    %v315 = vmul.f32 %v313, %v275
    %v316 = vmul.f32 %v309, %v276
    %v317 = vmul.f32 %v313, %v277
    %v318 = vmul.f32 %v293, %v262
    %v319 = vmul.f32 %v297, %v263
    %v320 = vmul.f32 %v293, %v264
    %v321 = vmul.f32 %v297, %v265
    %v322 = vadd.f32 %v314, %v318
    %v323 = vadd.f32 %v315, %v319
    %v324 = vadd.f32 %v316, %v320
    %v325 = vadd.f32 %v317, %v321
    %v326 = vand.u32 2147483647, %v302
    %v327 = vand.u32 2147483647, %v303
    %v328 = vand.u32 2147483647, %v304
    %v329 = vand.u32 2147483647, %v305
    %v330 = vmul.f32 %v326, %v326
    %v331 = vmul.f32 %v327, %v327
    %v332 = vmul.f32 %v328, %v328
    %v333 = vmul.f32 %v329, %v329
    %v334 = vmul.f32 %v326, %v330
    %v335 = vmul.f32 %v327, %v331
    %v336 = vmul.f32 %v328, %v332
    %v337 = vmul.f32 %v329, %v333
    %vm338 = vcmp.le.f32.partialorder %v326, 1.0
    %vm339 = vcmp.le.f32.partialorder %v327, 1.0
    %vm340 = vcmp.le.f32.partialorder %v328, 1.0
    %vm341 = vcmp.le.f32.partialorder %v329, 1.0
    %v342 = vsel %vm338, 1, 0
    %v343 = vsel %vm339, 1, 0
    %v344 = vsel %vm340, 1, 0
    %v345 = vsel %vm341, 1, 0
    %v346 = vcvt.s32.f32 %v342
    %v347 = vcvt.s32.f32 %v343
    %v348 = vcvt.s32.f32 %v344
    %v349 = vcvt.s32.f32 %v345
    %vm350 = vcmp.gt.f32.partialorder %v326, 1.0
    %vm351 = vcmp.gt.f32.partialorder %v327, 1.0
    %vm352 = vcmp.gt.f32.partialorder %v328, 1.0
    %vm353 = vcmp.gt.f32.partialorder %v329, 1.0
    %vm354 = vcmp.le.f32.partialorder %v326, 2.0
    %vm355 = vcmp.le.f32.partialorder %v327, 2.0
    %vm356 = vcmp.le.f32.partialorder %v328, 2.0
    %vm357 = vcmp.le.f32.partialorder %v329, 2.0
    %vm358 = vmand %vm350, %vm354
    %vm359 = vmand %vm351, %vm355
    %vm360 = vmand %vm352, %vm356
    %vm361 = vmand %vm353, %vm357
    %v362 = vsel %vm358, 1, 0
    %v363 = vsel %vm359, 1, 0
    %v364 = vsel %vm360, 1, 0
    %v365 = vsel %vm361, 1, 0
    %v366 = vcvt.s32.f32 %v362
    %v367 = vcvt.s32.f32 %v363
    %v368 = vcvt.s32.f32 %v364
    %v369 = vcvt.s32.f32 %v365
    %v370 = vmul.f32 %v334, 1.5
    %v371 = vmul.f32 %v335, 1.5
    %v372 = vmul.f32 %v336, 1.5
    %v373 = vmul.f32 %v337, 1.5
    %v374 = vmul.f32 %v330, 2.5
    %v375 = vmul.f32 %v331, 2.5
    %v376 = vmul.f32 %v332, 2.5
    %v377 = vmul.f32 %v333, 2.5
    %v378 = vsub.f32 %v370, %v374
    %v379 = vsub.f32 %v371, %v375
    %v380 = vsub.f32 %v372, %v376
    %v381 = vsub.f32 %v373, %v377
    %v382 = vadd.f32 %v378, 1.0
    %v383 = vadd.f32 %v379, 1.0
    %v384 = vadd.f32 %v380, 1.0
    %v385 = vadd.f32 %v381, 1.0
    %v386 = vmul.f32 %v382, %v346
    %v387 = vmul.f32 %v383, %v347
    %v388 = vmul.f32 %v384, %v348
    %v389 = vmul.f32 %v385, %v349
    %v390 = vmul.f32 %v334, -0.5
    %v391 = vmul.f32 %v335, -0.5
    %v392 = vmul.f32 %v336, -0.5
    %v393 = vmul.f32 %v337, -0.5
    %v394 = vmul.f32 %v330, -2.5
    %v395 = vmul.f32 %v331, -2.5
    %v396 = vmul.f32 %v332, -2.5
    %v397 = vmul.f32 %v333, -2.5
    %v398 = vsub.f32 %v390, %v394
    %v399 = vsub.f32 %v391, %v395
    %v400 = vsub.f32 %v392, %v396
    %v401 = vsub.f32 %v393, %v397
    %v402 = vmul.f32 %v326, -4.0
    %v403 = vmul.f32 %v327, -4.0
    %v404 = vmul.f32 %v328, -4.0
    %v405 = vmul.f32 %v329, -4.0
    %v406 = vadd.f32 %v398, %v402
    %v407 = vadd.f32 %v399, %v403
    %v408 = vadd.f32 %v400, %v404
    %v409 = vadd.f32 %v401, %v405
    %v410 = vsub.f32 %v406, -2.0
    %v411 = vsub.f32 %v407, -2.0
    %v412 = vsub.f32 %v408, -2.0
    %v413 = vsub.f32 %v409, -2.0
    %v414 = vmul.f32 %v410, %v366
    %v415 = vmul.f32 %v411, %v367
    %v416 = vmul.f32 %v412, %v368
    %v417 = vmul.f32 %v413, %v369
    %v418 = vadd.f32 %v386, %v414
    %v419 = vadd.f32 %v387, %v415
    %v420 = vadd.f32 %v388, %v416
    %v421 = vadd.f32 %v389, %v417
    %v422 = vand.u32 2147483647, %v322
    %v423 = vand.u32 2147483647, %v323
    %v424 = vand.u32 2147483647, %v324
    %v425 = vand.u32 2147483647, %v325
    %v426 = vmul.f32 %v422, %v422
    %v427 = vmul.f32 %v423, %v423
    %v428 = vmul.f32 %v424, %v424
    %v429 = vmul.f32 %v425, %v425
    %v430 = vmul.f32 %v422, %v426
    %v431 = vmul.f32 %v423, %v427
    %v432 = vmul.f32 %v424, %v428
    %v433 = vmul.f32 %v425, %v429
    %vm434 = vcmp.le.f32.partialorder %v422, 1.0
    %vm435 = vcmp.le.f32.partialorder %v423, 1.0
    %vm436 = vcmp.le.f32.partialorder %v424, 1.0
    %vm437 = vcmp.le.f32.partialorder %v425, 1.0
    %v438 = vsel %vm434, 1, 0
    %v439 = vsel %vm435, 1, 0
    %v440 = vsel %vm436, 1, 0
    %v441 = vsel %vm437, 1, 0
    %v442 = vcvt.s32.f32 %v438
    %v443 = vcvt.s32.f32 %v439
    %v444 = vcvt.s32.f32 %v440
    %v445 = vcvt.s32.f32 %v441
    %vm446 = vcmp.gt.f32.partialorder %v422, 1.0
    %vm447 = vcmp.gt.f32.partialorder %v423, 1.0
    %vm448 = vcmp.gt.f32.partialorder %v424, 1.0
    %vm449 = vcmp.gt.f32.partialorder %v425, 1.0
    %vm450 = vcmp.le.f32.partialorder %v422, 2.0
    %vm451 = vcmp.le.f32.partialorder %v423, 2.0
    %vm452 = vcmp.le.f32.partialorder %v424, 2.0
    %vm453 = vcmp.le.f32.partialorder %v425, 2.0
    %vm454 = vmand %vm446, %vm450
    %vm455 = vmand %vm447, %vm451
    %vm456 = vmand %vm448, %vm452
    %vm457 = vmand %vm449, %vm453
    %v458 = vsel %vm454, 1, 0
    %v459 = vsel %vm455, 1, 0
    %v460 = vsel %vm456, 1, 0
    %v461 = vsel %vm457, 1, 0
    %v462 = vcvt.s32.f32 %v458
    %v463 = vcvt.s32.f32 %v459
    %v464 = vcvt.s32.f32 %v460
    %v465 = vcvt.s32.f32 %v461
    %v466 = vmul.f32 %v430, 1.5
    %v467 = vmul.f32 %v431, 1.5
    %v468 = vmul.f32 %v432, 1.5
    %v469 = vmul.f32 %v433, 1.5
    %v470 = vmul.f32 %v426, 2.5
    %v471 = vmul.f32 %v427, 2.5
    %v472 = vmul.f32 %v428, 2.5
    %v473 = vmul.f32 %v429, 2.5
    %v474 = vsub.f32 %v466, %v470
    %v475 = vsub.f32 %v467, %v471
    %v476 = vsub.f32 %v468, %v472
    %v477 = vsub.f32 %v469, %v473
    %v478 = vadd.f32 %v474, 1.0
    %v479 = vadd.f32 %v475, 1.0
    %v480 = vadd.f32 %v476, 1.0
    %v481 = vadd.f32 %v477, 1.0
    %v482 = vmul.f32 %v478, %v442
    %v483 = vmul.f32 %v479, %v443
    %v484 = vmul.f32 %v480, %v444
    %v485 = vmul.f32 %v481, %v445
    %v486 = vmul.f32 %v430, -0.5
    %v487 = vmul.f32 %v431, -0.5
    %v488 = vmul.f32 %v432, -0.5
    %v489 = vmul.f32 %v433, -0.5
    %v490 = vmul.f32 %v426, -2.5
    %v491 = vmul.f32 %v427, -2.5
    %v492 = vmul.f32 %v428, -2.5
    %v493 = vmul.f32 %v429, -2.5
    %v494 = vsub.f32 %v486, %v490
    %v495 = vsub.f32 %v487, %v491
    %v496 = vsub.f32 %v488, %v492
    %v497 = vsub.f32 %v489, %v493
    %v498 = vmul.f32 %v422, -4.0
    %v499 = vmul.f32 %v423, -4.0
    %v500 = vmul.f32 %v424, -4.0
    %v501 = vmul.f32 %v425, -4.0
    %v502 = vadd.f32 %v494, %v498
    %v503 = vadd.f32 %v495, %v499
    %v504 = vadd.f32 %v496, %v500
    %v505 = vadd.f32 %v497, %v501
    %v506 = vsub.f32 %v502, -2.0
    %v507 = vsub.f32 %v503, -2.0
    %v508 = vsub.f32 %v504, -2.0
    %v509 = vsub.f32 %v505, -2.0
    %v510 = vmul.f32 %v506, %v462
    %v511 = vmul.f32 %v507, %v463
    %v512 = vmul.f32 %v508, %v464
    %v513 = vmul.f32 %v509, %v465
    %v514 = vadd.f32 %v482, %v510
    %v515 = vadd.f32 %v483, %v511
    %v516 = vadd.f32 %v484, %v512
    %v517 = vadd.f32 %v485, %v513
    %v518 = vmul.f32 %v418, %v514
    %v519 = vmul.f32 %v419, %v515
    %v520 = vmul.f32 %v420, %v516
    %v521 = vmul.f32 %v421, %v517
    %v522 = vadd.f32 %v518, %v520
    %v523 = vrot.slane %v522, 4
    %v524 = vadd.f32 %v522, %v523
    %v525 = vrot.slane %v524, 2
    %v526 = vadd.f32 %v524, %v525
    %v527 = vrot.slane %v526, 1
    %v528 = vadd.f32 %v526, %v527
    %v529 = vadd.f32 %v519, %v521
    %v530 = vrot.slane %v529, 4
    %v531 = vadd.f32 %v529, %v530
    %v532 = vrot.slane %v531, 2
    %v533 = vadd.f32 %v531, %v532
    %v534 = vrot.slane %v533, 1
    %v535 = vadd.f32 %v533, %v534
    %v536 = vrcp.pop %v528
    %v537 = vrcp.pop %v535
    %v538 = vmul.f32 %v528, %v536
    %v539 = vmul.f32 %v535, %v537
    %v540 = vsub.f32 2.0, %v538
    %v541 = vsub.f32 2.0, %v539
    %v542 = vmul.f32 %v536, %v540
    %v543 = vmul.f32 %v537, %v541
    %v544 = vmul.f32 %v518, %v542
    %v545 = vmul.f32 %v519, %v543
    %v546 = vmul.f32 %v520, %v542
    %v547 = vmul.f32 %v521, %v543
    %548 = vst [vmem:[#allocation5] sm:$0xff] %v544
    %549 = vst [vmem:[#allocation5 + $0x8] sm:$0xff] %v545
    %550 = vst [vmem:[#allocation5 + $0x10] sm:$0xff] %v546
    %551 = vst [vmem:[#allocation5 + $0x18] sm:$0xff] %v547
    // Predicated region
    $region10: #{tpu_custom_call.1} parent=1 // pred_check
      _
    $region11: #{tpu_custom_call.1} parent=1 // pred_check_branch
      %553 = sbr.rel (0) target = $region13
    $region12: #{tpu_custom_call.1} parent=1 // pred_region
      %s555 = ssub.s32 512, 512
      %556 = vsyncadd [#allocation4], %s555
      %s557 = sshll.u32 [#allocation5], 4
      %s558 = int_to_ptr.vmem [resolvable:$true] %s557
      %563 = dma.vmem_to_hbm [thread:$0]  %s558, 512, %s1, [#allocation4], 256, 256, 16
    $region13: #{tpu_custom_call.1} parent=1 // pred_fallthru
      _
    // Predicated region
    $region14: #{tpu_custom_call.1} parent=1 // pred_check
      _
    $region15: #{tpu_custom_call.1} parent=1 // pred_check_branch
      %565 = sbr.rel (0) target = $region17
    $region16: #{tpu_custom_call.1} parent=1 // pred_region
      %566 = dma.done [#allocation4], 512
    $region17: #{tpu_custom_call.1} parent=1 // pred_fallthru
      _
    %567 = vsyncpa [#allocation3], 1
    %568 = vsyncpa [#allocation4], 1

</llo_original>
